<compile_context>
chip_gen: v7x
topology: tpu7x:2x2x1
jax: 0.10.0
libtpu: 0.0.40
codegen_flags: <defaults>
</compile_context>

<pallas_src>
from functools import partial

import jax
import jax.numpy as jnp
from jax.experimental import pallas as pl
from jax.experimental.pallas import tpu as pltpu

EPS = 1e-5
SLOPE = 0.2


# ---------------------------------------------------------------------------
# Fused Pallas kernel: entire DeepMDS forward (uniform padded width)
# ---------------------------------------------------------------------------
def _make_fused_kernel(num_blocks, out_dim):
    def kernel(x_ref, w_ref, gb_ref, o_ref):
        def lrelu(v):
            return jnp.maximum(v, SLOPE * v)

        def lin_bn(v, li):
            # Linear (MXU matmul, f32 accumulate).  No bias: BN cancels it.
            y = jnp.dot(v, w_ref[li], preferred_element_type=jnp.float32)
            # One-pass train-mode BatchNorm statistics (per column, over batch).
            mean = jnp.mean(y, axis=0, keepdims=True)
            meansq = jnp.mean(y * y, axis=0, keepdims=True)
            var = meansq - mean * mean
            gb = gb_ref[li]                                   # [2, max_dim]
            scale = gb[0:1, :] * jax.lax.rsqrt(var + EPS)     # gamma * rsqrt
            shift = gb[1:2, :]                                # beta
            return (y - mean) * scale + shift

        x = x_ref[...]
        li = 0
        for _ in range(num_blocks):                           # CompressionBlock
            h1 = lrelu(lin_bn(x, li)); li += 1                # layer1
            t = lrelu(lin_bn(h1, li)); li += 1                # BasicBlock lin1
            t = lin_bn(t, li); li += 1                        # BasicBlock lin2
            h2 = lrelu(t + h1)                                # residual + LReLU
            x = lin_bn(h2, li); li += 1                       # layer3
        o_ref[...] = x[:, :out_dim]

    return kernel


@partial(jax.jit, static_argnums=(3, 4))
def deepmds_forward_pallas(x, w_packed, gb_packed, max_dim, out_dim):
    """x: [N, C, 1, 1] or [B, C] f32.
    w_packed: [L, max_dim, max_dim] zero-padded weights.
    gb_packed: [L, 2, max_dim] zero-padded (gamma, beta)."""
    if x.ndim > 2:                                            # x.squeeze(2).squeeze(2)
        x = jnp.squeeze(x, axis=(2, 3))
    B, d_in = x.shape
    if d_in < max_dim:
        x = jnp.pad(x, ((0, 0), (0, max_dim - d_in)))

    num_layers = w_packed.shape[0]
    num_blocks = num_layers // 4

    kernel = _make_fused_kernel(num_blocks, out_dim)
    return pl.pallas_call(
        kernel,
        out_shape=jax.ShapeDtypeStruct((B, out_dim), jnp.float32),
        in_specs=[pl.BlockSpec(memory_space=pltpu.MemorySpace.VMEM)] * 3,
        out_specs=pl.BlockSpec(memory_space=pltpu.MemorySpace.VMEM),
    )(x, w_packed, gb_packed)


# ---------------------------------------------------------------------------
# Parameter packing (host side, done once)
# ---------------------------------------------------------------------------
def pack_params(block_params):
    """block_params: per block, list of 4 (W[din,dout], gamma[dout], beta[dout]).
    Returns (w_packed [L,maxd,maxd], gb_packed [L,2,maxd], max_dim, out_dim)."""
    all_layers = [p for blk in block_params for p in blk]
    max_dim = max(max(w.shape) for (w, _, _) in all_layers)
    L = len(all_layers)

    w_packed = jnp.zeros((L, max_dim, max_dim), jnp.float32)
    gb_packed = jnp.zeros((L, 2, max_dim), jnp.float32)
    for li, (w, g, be) in enumerate(all_layers):
        din, dout = w.shape
        w_packed = w_packed.at[li, :din, :dout].set(w)
        gb_packed = gb_packed.at[li, 0, :dout].set(g)
        gb_packed = gb_packed.at[li, 1, :dout].set(be)

    out_dim = all_layers[-1][0].shape[1]
    return w_packed, gb_packed, int(max_dim), int(out_dim)


# ---------------------------------------------------------------------------
# Parameter construction (deterministic, synthetic)
# ---------------------------------------------------------------------------
def make_deepmds_params(key, layer_sizes):
    """Returns (kernel_params, ref_params).  ref_params carry the Linear biases
    so the reference proves they are cancelled by train-mode BatchNorm."""
    kernel_blocks, ref_blocks = [], []
    for s_in, s_out in zip(layer_sizes, layer_sizes[1:]):
        shapes = [(s_in, s_in), (s_in, s_in), (s_in, s_in), (s_in, s_out)]
        kblk, rblk = [], []
        for din, dout in shapes:
            key, kw, kb, kg, kbe = jax.random.split(key, 5)
            w = jax.random.normal(kw, (din, dout), jnp.float32) / jnp.sqrt(jnp.float32(din))
            b = 0.05 * jax.random.normal(kb, (dout,), jnp.float32)   # ref only
            g = 1.0 + 0.1 * jax.random.normal(kg, (dout,), jnp.float32)
            be = 0.05 * jax.random.normal(kbe, (dout,), jnp.float32)
            kblk.append((w, g, be))
            rblk.append((w, b, g, be))
        kernel_blocks.append(kblk)
        ref_blocks.append(rblk)
    return kernel_blocks, ref_blocks


# ---------------------------------------------------------------------------
# Pure-JAX reference (matches PyTorch forward, incl. the Linear biases)
# ---------------------------------------------------------------------------
def _ref_forward(x, ref_blocks):
    if x.ndim > 2:
        x = jnp.squeeze(x, axis=(2, 3))

    def lrelu(v):
        return jnp.where(v >= 0, v, SLOPE * v)

    def lin_bn(v, w, b, g, be):
        y = v @ w + b
        m = y.mean(0, keepdims=True)
        var = ((y - m) ** 2).mean(0, keepdims=True)       # biased, train-mode
        return (y - m) / jnp.sqrt(var + EPS) * g + be

    for blk in ref_blocks:
        (w1, b1, g1, be1), (w2, b2, g2, be2), \
            (w3, b3, g3, be3), (w4, b4, g4, be4) = blk
        h1 = lrelu(lin_bn(x, w1, b1, g1, be1))            # layer1
        t = lrelu(lin_bn(h1, w2, b2, g2, be2))            # BasicBlock lin1
        t = lin_bn(t, w3, b3, g3, be3)                    # BasicBlock lin2
        h2 = lrelu(t + h1)                                # residual + LReLU
        x = lin_bn(h2, w4, b4, g4, be4)                   # layer3
    return x


if __name__ == "__main__":
    layer_sizes = (64, 32, 16)        # DeepMDS((64, 32, 16)) -> 2 CompressionBlocks
    batch = 8

    key = jax.random.PRNGKey(0)
    key, kx, kp = jax.random.split(key, 3)
    x = jax.random.normal(kx, (batch, layer_sizes[0], 1, 1), jnp.float32)  # [N,C,1,1]

    kernel_blocks, ref_blocks = make_deepmds_params(kp, layer_sizes)
    w_packed, gb_packed, max_dim, out_dim = pack_params(kernel_blocks)

    out = jax.block_until_ready(
        deepmds_forward_pallas(x, w_packed, gb_packed, max_dim, out_dim))

    ref = jax.block_until_ready(_ref_forward(x, ref_blocks))
    assert out.shape == (batch, layer_sizes[-1]), out.shape
    assert jnp.allclose(out, ref, atol=2e-4, rtol=2e-4), \
        float(jnp.max(jnp.abs(out - ref)))

    print("KERNEL_OK")
</pallas_src>

<mosaic_0001>
module attributes {stable_mosaic.version = 11 : i64} {
  func.func @kernel(%arg0: memref<8x64xf32, #tpu.memory_space<vmem>>, %arg1: memref<8x64x64xf32, #tpu.memory_space<vmem>>, %arg2: memref<8x2x64xf32, #tpu.memory_space<vmem>>, %arg3: memref<8x16xf32, #tpu.memory_space<vmem>>) attributes {dimension_semantics = [], scalar_prefetch = 0 : i64, scratch_operands = 0 : i64, tpu.core_type = #tpu.core_type<tc>} {
    %c0 = arith.constant 0 : index
    %c0_0 = arith.constant 0 : index
    %0 = vector.load %arg0[%c0, %c0_0] : memref<8x64xf32, #tpu.memory_space<vmem>>, vector<8x64xf32>
    %c0_1 = arith.constant 0 : index
    %c0_2 = arith.constant 0 : index
    %c0_3 = arith.constant 0 : index
    %1 = vector.load %arg1[%c0_1, %c0_2, %c0_3] : memref<8x64x64xf32, #tpu.memory_space<vmem>>, vector<1x64x64xf32>
    %2 = vector.shape_cast %1 : vector<1x64x64xf32> to vector<64x64xf32>
    %cst = arith.constant dense<0.000000e+00> : vector<8x64xf32>
    %3 = tpu.matmul %0, %2, %cst {dimension_numbers = #tpu.dot_dimension_numbers<[1], [0], [0], [1], [0, 0, 1, 1], [], []>} : vector<8x64xf32>, vector<64x64xf32>, vector<8x64xf32> -> vector<8x64xf32>
    %cst_4 = arith.constant dense<0.000000e+00> : vector<64xf32>
    %4 = vector.multi_reduction <add>, %3, %cst_4 [0] : vector<8x64xf32> to vector<64xf32>
    %5 = vector.shape_cast %4 : vector<64xf32> to vector<1x64xf32>
    %cst_5 = arith.constant 8.000000e+00 : f32
    %6 = vector.broadcast %cst_5 : f32 to vector<1x64xf32>
    %7 = arith.divf %5, %6 : vector<1x64xf32>
    %8 = arith.mulf %3, %3 : vector<8x64xf32>
    %cst_6 = arith.constant dense<0.000000e+00> : vector<64xf32>
    %9 = vector.multi_reduction <add>, %8, %cst_6 [0] : vector<8x64xf32> to vector<64xf32>
    %10 = vector.shape_cast %9 : vector<64xf32> to vector<1x64xf32>
    %cst_7 = arith.constant 8.000000e+00 : f32
    %11 = vector.broadcast %cst_7 : f32 to vector<1x64xf32>
    %12 = arith.divf %10, %11 : vector<1x64xf32>
    %13 = arith.mulf %7, %7 : vector<1x64xf32>
    %14 = arith.subf %12, %13 : vector<1x64xf32>
    %c0_8 = arith.constant 0 : index
    %c0_9 = arith.constant 0 : index
    %c0_10 = arith.constant 0 : index
    %15 = vector.load %arg2[%c0_8, %c0_9, %c0_10] : memref<8x2x64xf32, #tpu.memory_space<vmem>>, vector<1x2x64xf32>
    %16 = vector.shape_cast %15 : vector<1x2x64xf32> to vector<2x64xf32>
    %17 = vector.extract_strided_slice %16 {offsets = [0, 0], sizes = [1, 64], strides = [1, 1]} : vector<2x64xf32> to vector<1x64xf32>
    %cst_11 = arith.constant 9.99999974E-6 : f32
    %18 = vector.broadcast %cst_11 : f32 to vector<1x64xf32>
    %19 = arith.addf %14, %18 : vector<1x64xf32>
    %20 = math.rsqrt %19 : vector<1x64xf32>
    %21 = arith.mulf %17, %20 : vector<1x64xf32>
    %22 = vector.extract_strided_slice %16 {offsets = [1, 0], sizes = [1, 64], strides = [1, 1]} : vector<2x64xf32> to vector<1x64xf32>
    %23 = vector.broadcast %7 : vector<1x64xf32> to vector<8x64xf32>
    %24 = arith.subf %3, %23 : vector<8x64xf32>
    %25 = vector.broadcast %21 : vector<1x64xf32> to vector<8x64xf32>
    %26 = arith.mulf %24, %25 : vector<8x64xf32>
    %27 = vector.broadcast %22 : vector<1x64xf32> to vector<8x64xf32>
    %28 = arith.addf %26, %27 : vector<8x64xf32>
    %cst_12 = arith.constant 2.000000e-01 : f32
    %29 = vector.broadcast %cst_12 : f32 to vector<8x64xf32>
    %30 = arith.mulf %29, %28 : vector<8x64xf32>
    %31 = arith.maximumf %28, %30 : vector<8x64xf32>
    %c1 = arith.constant 1 : index
    %c0_13 = arith.constant 0 : index
    %c0_14 = arith.constant 0 : index
    %32 = vector.load %arg1[%c1, %c0_13, %c0_14] : memref<8x64x64xf32, #tpu.memory_space<vmem>>, vector<1x64x64xf32>
    %33 = vector.shape_cast %32 : vector<1x64x64xf32> to vector<64x64xf32>
    %cst_15 = arith.constant dense<0.000000e+00> : vector<8x64xf32>
    %34 = tpu.matmul %31, %33, %cst_15 {dimension_numbers = #tpu.dot_dimension_numbers<[1], [0], [0], [1], [0, 0, 1, 1], [], []>} : vector<8x64xf32>, vector<64x64xf32>, vector<8x64xf32> -> vector<8x64xf32>
    %cst_16 = arith.constant dense<0.000000e+00> : vector<64xf32>
    %35 = vector.multi_reduction <add>, %34, %cst_16 [0] : vector<8x64xf32> to vector<64xf32>
    %36 = vector.shape_cast %35 : vector<64xf32> to vector<1x64xf32>
    %cst_17 = arith.constant 8.000000e+00 : f32
    %37 = vector.broadcast %cst_17 : f32 to vector<1x64xf32>
    %38 = arith.divf %36, %37 : vector<1x64xf32>
    %39 = arith.mulf %34, %34 : vector<8x64xf32>
    %cst_18 = arith.constant dense<0.000000e+00> : vector<64xf32>
    %40 = vector.multi_reduction <add>, %39, %cst_18 [0] : vector<8x64xf32> to vector<64xf32>
    %41 = vector.shape_cast %40 : vector<64xf32> to vector<1x64xf32>
    %cst_19 = arith.constant 8.000000e+00 : f32
    %42 = vector.broadcast %cst_19 : f32 to vector<1x64xf32>
    %43 = arith.divf %41, %42 : vector<1x64xf32>
    %44 = arith.mulf %38, %38 : vector<1x64xf32>
    %45 = arith.subf %43, %44 : vector<1x64xf32>
    %c1_20 = arith.constant 1 : index
    %c0_21 = arith.constant 0 : index
    %c0_22 = arith.constant 0 : index
    %46 = vector.load %arg2[%c1_20, %c0_21, %c0_22] : memref<8x2x64xf32, #tpu.memory_space<vmem>>, vector<1x2x64xf32>
    %47 = vector.shape_cast %46 : vector<1x2x64xf32> to vector<2x64xf32>
    %48 = vector.extract_strided_slice %47 {offsets = [0, 0], sizes = [1, 64], strides = [1, 1]} : vector<2x64xf32> to vector<1x64xf32>
    %cst_23 = arith.constant 9.99999974E-6 : f32
    %49 = vector.broadcast %cst_23 : f32 to vector<1x64xf32>
    %50 = arith.addf %45, %49 : vector<1x64xf32>
    %51 = math.rsqrt %50 : vector<1x64xf32>
    %52 = arith.mulf %48, %51 : vector<1x64xf32>
    %53 = vector.extract_strided_slice %47 {offsets = [1, 0], sizes = [1, 64], strides = [1, 1]} : vector<2x64xf32> to vector<1x64xf32>
    %54 = vector.broadcast %38 : vector<1x64xf32> to vector<8x64xf32>
    %55 = arith.subf %34, %54 : vector<8x64xf32>
    %56 = vector.broadcast %52 : vector<1x64xf32> to vector<8x64xf32>
    %57 = arith.mulf %55, %56 : vector<8x64xf32>
    %58 = vector.broadcast %53 : vector<1x64xf32> to vector<8x64xf32>
    %59 = arith.addf %57, %58 : vector<8x64xf32>
    %cst_24 = arith.constant 2.000000e-01 : f32
    %60 = vector.broadcast %cst_24 : f32 to vector<8x64xf32>
    %61 = arith.mulf %60, %59 : vector<8x64xf32>
    %62 = arith.maximumf %59, %61 : vector<8x64xf32>
    %c2 = arith.constant 2 : index
    %c0_25 = arith.constant 0 : index
    %c0_26 = arith.constant 0 : index
    %63 = vector.load %arg1[%c2, %c0_25, %c0_26] : memref<8x64x64xf32, #tpu.memory_space<vmem>>, vector<1x64x64xf32>
    %64 = vector.shape_cast %63 : vector<1x64x64xf32> to vector<64x64xf32>
    %cst_27 = arith.constant dense<0.000000e+00> : vector<8x64xf32>
    %65 = tpu.matmul %62, %64, %cst_27 {dimension_numbers = #tpu.dot_dimension_numbers<[1], [0], [0], [1], [0, 0, 1, 1], [], []>} : vector<8x64xf32>, vector<64x64xf32>, vector<8x64xf32> -> vector<8x64xf32>
    %cst_28 = arith.constant dense<0.000000e+00> : vector<64xf32>
    %66 = vector.multi_reduction <add>, %65, %cst_28 [0] : vector<8x64xf32> to vector<64xf32>
    %67 = vector.shape_cast %66 : vector<64xf32> to vector<1x64xf32>
    %cst_29 = arith.constant 8.000000e+00 : f32
    %68 = vector.broadcast %cst_29 : f32 to vector<1x64xf32>
    %69 = arith.divf %67, %68 : vector<1x64xf32>
    %70 = arith.mulf %65, %65 : vector<8x64xf32>
    %cst_30 = arith.constant dense<0.000000e+00> : vector<64xf32>
    %71 = vector.multi_reduction <add>, %70, %cst_30 [0] : vector<8x64xf32> to vector<64xf32>
    %72 = vector.shape_cast %71 : vector<64xf32> to vector<1x64xf32>
    %cst_31 = arith.constant 8.000000e+00 : f32
    %73 = vector.broadcast %cst_31 : f32 to vector<1x64xf32>
    %74 = arith.divf %72, %73 : vector<1x64xf32>
    %75 = arith.mulf %69, %69 : vector<1x64xf32>
    %76 = arith.subf %74, %75 : vector<1x64xf32>
    %c2_32 = arith.constant 2 : index
    %c0_33 = arith.constant 0 : index
    %c0_34 = arith.constant 0 : index
    %77 = vector.load %arg2[%c2_32, %c0_33, %c0_34] : memref<8x2x64xf32, #tpu.memory_space<vmem>>, vector<1x2x64xf32>
    %78 = vector.shape_cast %77 : vector<1x2x64xf32> to vector<2x64xf32>
    %79 = vector.extract_strided_slice %78 {offsets = [0, 0], sizes = [1, 64], strides = [1, 1]} : vector<2x64xf32> to vector<1x64xf32>
    %cst_35 = arith.constant 9.99999974E-6 : f32
    %80 = vector.broadcast %cst_35 : f32 to vector<1x64xf32>
    %81 = arith.addf %76, %80 : vector<1x64xf32>
    %82 = math.rsqrt %81 : vector<1x64xf32>
    %83 = arith.mulf %79, %82 : vector<1x64xf32>
    %84 = vector.extract_strided_slice %78 {offsets = [1, 0], sizes = [1, 64], strides = [1, 1]} : vector<2x64xf32> to vector<1x64xf32>
    %85 = vector.broadcast %69 : vector<1x64xf32> to vector<8x64xf32>
    %86 = arith.subf %65, %85 : vector<8x64xf32>
    %87 = vector.broadcast %83 : vector<1x64xf32> to vector<8x64xf32>
    %88 = arith.mulf %86, %87 : vector<8x64xf32>
    %89 = vector.broadcast %84 : vector<1x64xf32> to vector<8x64xf32>
    %90 = arith.addf %88, %89 : vector<8x64xf32>
    %91 = arith.addf %90, %31 : vector<8x64xf32>
    %cst_36 = arith.constant 2.000000e-01 : f32
    %92 = vector.broadcast %cst_36 : f32 to vector<8x64xf32>
    %93 = arith.mulf %92, %91 : vector<8x64xf32>
    %94 = arith.maximumf %91, %93 : vector<8x64xf32>
    %c3 = arith.constant 3 : index
    %c0_37 = arith.constant 0 : index
    %c0_38 = arith.constant 0 : index
    %95 = vector.load %arg1[%c3, %c0_37, %c0_38] : memref<8x64x64xf32, #tpu.memory_space<vmem>>, vector<1x64x64xf32>
    %96 = vector.shape_cast %95 : vector<1x64x64xf32> to vector<64x64xf32>
    %cst_39 = arith.constant dense<0.000000e+00> : vector<8x64xf32>
    %97 = tpu.matmul %94, %96, %cst_39 {dimension_numbers = #tpu.dot_dimension_numbers<[1], [0], [0], [1], [0, 0, 1, 1], [], []>} : vector<8x64xf32>, vector<64x64xf32>, vector<8x64xf32> -> vector<8x64xf32>
    %cst_40 = arith.constant dense<0.000000e+00> : vector<64xf32>
    %98 = vector.multi_reduction <add>, %97, %cst_40 [0] : vector<8x64xf32> to vector<64xf32>
    %99 = vector.shape_cast %98 : vector<64xf32> to vector<1x64xf32>
    %cst_41 = arith.constant 8.000000e+00 : f32
    %100 = vector.broadcast %cst_41 : f32 to vector<1x64xf32>
    %101 = arith.divf %99, %100 : vector<1x64xf32>
    %102 = arith.mulf %97, %97 : vector<8x64xf32>
    %cst_42 = arith.constant dense<0.000000e+00> : vector<64xf32>
    %103 = vector.multi_reduction <add>, %102, %cst_42 [0] : vector<8x64xf32> to vector<64xf32>
    %104 = vector.shape_cast %103 : vector<64xf32> to vector<1x64xf32>
    %cst_43 = arith.constant 8.000000e+00 : f32
    %105 = vector.broadcast %cst_43 : f32 to vector<1x64xf32>
    %106 = arith.divf %104, %105 : vector<1x64xf32>
    %107 = arith.mulf %101, %101 : vector<1x64xf32>
    %108 = arith.subf %106, %107 : vector<1x64xf32>
    %c3_44 = arith.constant 3 : index
    %c0_45 = arith.constant 0 : index
    %c0_46 = arith.constant 0 : index
    %109 = vector.load %arg2[%c3_44, %c0_45, %c0_46] : memref<8x2x64xf32, #tpu.memory_space<vmem>>, vector<1x2x64xf32>
    %110 = vector.shape_cast %109 : vector<1x2x64xf32> to vector<2x64xf32>
    %111 = vector.extract_strided_slice %110 {offsets = [0, 0], sizes = [1, 64], strides = [1, 1]} : vector<2x64xf32> to vector<1x64xf32>
    %cst_47 = arith.constant 9.99999974E-6 : f32
    %112 = vector.broadcast %cst_47 : f32 to vector<1x64xf32>
    %113 = arith.addf %108, %112 : vector<1x64xf32>
    %114 = math.rsqrt %113 : vector<1x64xf32>
    %115 = arith.mulf %111, %114 : vector<1x64xf32>
    %116 = vector.extract_strided_slice %110 {offsets = [1, 0], sizes = [1, 64], strides = [1, 1]} : vector<2x64xf32> to vector<1x64xf32>
    %117 = vector.broadcast %101 : vector<1x64xf32> to vector<8x64xf32>
    %118 = arith.subf %97, %117 : vector<8x64xf32>
    %119 = vector.broadcast %115 : vector<1x64xf32> to vector<8x64xf32>
    %120 = arith.mulf %118, %119 : vector<8x64xf32>
    %121 = vector.broadcast %116 : vector<1x64xf32> to vector<8x64xf32>
    %122 = arith.addf %120, %121 : vector<8x64xf32>
    %c4 = arith.constant 4 : index
    %c0_48 = arith.constant 0 : index
    %c0_49 = arith.constant 0 : index
    %123 = vector.load %arg1[%c4, %c0_48, %c0_49] : memref<8x64x64xf32, #tpu.memory_space<vmem>>, vector<1x64x64xf32>
    %124 = vector.shape_cast %123 : vector<1x64x64xf32> to vector<64x64xf32>
    %cst_50 = arith.constant dense<0.000000e+00> : vector<8x64xf32>
    %125 = tpu.matmul %122, %124, %cst_50 {dimension_numbers = #tpu.dot_dimension_numbers<[1], [0], [0], [1], [0, 0, 1, 1], [], []>} : vector<8x64xf32>, vector<64x64xf32>, vector<8x64xf32> -> vector<8x64xf32>
    %cst_51 = arith.constant dense<0.000000e+00> : vector<64xf32>
    %126 = vector.multi_reduction <add>, %125, %cst_51 [0] : vector<8x64xf32> to vector<64xf32>
    %127 = vector.shape_cast %126 : vector<64xf32> to vector<1x64xf32>
    %cst_52 = arith.constant 8.000000e+00 : f32
    %128 = vector.broadcast %cst_52 : f32 to vector<1x64xf32>
    %129 = arith.divf %127, %128 : vector<1x64xf32>
    %130 = arith.mulf %125, %125 : vector<8x64xf32>
    %cst_53 = arith.constant dense<0.000000e+00> : vector<64xf32>
    %131 = vector.multi_reduction <add>, %130, %cst_53 [0] : vector<8x64xf32> to vector<64xf32>
    %132 = vector.shape_cast %131 : vector<64xf32> to vector<1x64xf32>
    %cst_54 = arith.constant 8.000000e+00 : f32
    %133 = vector.broadcast %cst_54 : f32 to vector<1x64xf32>
    %134 = arith.divf %132, %133 : vector<1x64xf32>
    %135 = arith.mulf %129, %129 : vector<1x64xf32>
    %136 = arith.subf %134, %135 : vector<1x64xf32>
    %c4_55 = arith.constant 4 : index
    %c0_56 = arith.constant 0 : index
    %c0_57 = arith.constant 0 : index
    %137 = vector.load %arg2[%c4_55, %c0_56, %c0_57] : memref<8x2x64xf32, #tpu.memory_space<vmem>>, vector<1x2x64xf32>
    %138 = vector.shape_cast %137 : vector<1x2x64xf32> to vector<2x64xf32>
    %139 = vector.extract_strided_slice %138 {offsets = [0, 0], sizes = [1, 64], strides = [1, 1]} : vector<2x64xf32> to vector<1x64xf32>
    %cst_58 = arith.constant 9.99999974E-6 : f32
    %140 = vector.broadcast %cst_58 : f32 to vector<1x64xf32>
    %141 = arith.addf %136, %140 : vector<1x64xf32>
    %142 = math.rsqrt %141 : vector<1x64xf32>
    %143 = arith.mulf %139, %142 : vector<1x64xf32>
    %144 = vector.extract_strided_slice %138 {offsets = [1, 0], sizes = [1, 64], strides = [1, 1]} : vector<2x64xf32> to vector<1x64xf32>
    %145 = vector.broadcast %129 : vector<1x64xf32> to vector<8x64xf32>
    %146 = arith.subf %125, %145 : vector<8x64xf32>
    %147 = vector.broadcast %143 : vector<1x64xf32> to vector<8x64xf32>
    %148 = arith.mulf %146, %147 : vector<8x64xf32>
    %149 = vector.broadcast %144 : vector<1x64xf32> to vector<8x64xf32>
    %150 = arith.addf %148, %149 : vector<8x64xf32>
    %cst_59 = arith.constant 2.000000e-01 : f32
    %151 = vector.broadcast %cst_59 : f32 to vector<8x64xf32>
    %152 = arith.mulf %151, %150 : vector<8x64xf32>
    %153 = arith.maximumf %150, %152 : vector<8x64xf32>
    %c5 = arith.constant 5 : index
    %c0_60 = arith.constant 0 : index
    %c0_61 = arith.constant 0 : index
    %154 = vector.load %arg1[%c5, %c0_60, %c0_61] : memref<8x64x64xf32, #tpu.memory_space<vmem>>, vector<1x64x64xf32>
    %155 = vector.shape_cast %154 : vector<1x64x64xf32> to vector<64x64xf32>
    %cst_62 = arith.constant dense<0.000000e+00> : vector<8x64xf32>
    %156 = tpu.matmul %153, %155, %cst_62 {dimension_numbers = #tpu.dot_dimension_numbers<[1], [0], [0], [1], [0, 0, 1, 1], [], []>} : vector<8x64xf32>, vector<64x64xf32>, vector<8x64xf32> -> vector<8x64xf32>
    %cst_63 = arith.constant dense<0.000000e+00> : vector<64xf32>
    %157 = vector.multi_reduction <add>, %156, %cst_63 [0] : vector<8x64xf32> to vector<64xf32>
    %158 = vector.shape_cast %157 : vector<64xf32> to vector<1x64xf32>
    %cst_64 = arith.constant 8.000000e+00 : f32
    %159 = vector.broadcast %cst_64 : f32 to vector<1x64xf32>
    %160 = arith.divf %158, %159 : vector<1x64xf32>
    %161 = arith.mulf %156, %156 : vector<8x64xf32>
    %cst_65 = arith.constant dense<0.000000e+00> : vector<64xf32>
    %162 = vector.multi_reduction <add>, %161, %cst_65 [0] : vector<8x64xf32> to vector<64xf32>
    %163 = vector.shape_cast %162 : vector<64xf32> to vector<1x64xf32>
    %cst_66 = arith.constant 8.000000e+00 : f32
    %164 = vector.broadcast %cst_66 : f32 to vector<1x64xf32>
    %165 = arith.divf %163, %164 : vector<1x64xf32>
    %166 = arith.mulf %160, %160 : vector<1x64xf32>
    %167 = arith.subf %165, %166 : vector<1x64xf32>
    %c5_67 = arith.constant 5 : index
    %c0_68 = arith.constant 0 : index
    %c0_69 = arith.constant 0 : index
    %168 = vector.load %arg2[%c5_67, %c0_68, %c0_69] : memref<8x2x64xf32, #tpu.memory_space<vmem>>, vector<1x2x64xf32>
    %169 = vector.shape_cast %168 : vector<1x2x64xf32> to vector<2x64xf32>
    %170 = vector.extract_strided_slice %169 {offsets = [0, 0], sizes = [1, 64], strides = [1, 1]} : vector<2x64xf32> to vector<1x64xf32>
    %cst_70 = arith.constant 9.99999974E-6 : f32
    %171 = vector.broadcast %cst_70 : f32 to vector<1x64xf32>
    %172 = arith.addf %167, %171 : vector<1x64xf32>
    %173 = math.rsqrt %172 : vector<1x64xf32>
    %174 = arith.mulf %170, %173 : vector<1x64xf32>
    %175 = vector.extract_strided_slice %169 {offsets = [1, 0], sizes = [1, 64], strides = [1, 1]} : vector<2x64xf32> to vector<1x64xf32>
    %176 = vector.broadcast %160 : vector<1x64xf32> to vector<8x64xf32>
    %177 = arith.subf %156, %176 : vector<8x64xf32>
    %178 = vector.broadcast %174 : vector<1x64xf32> to vector<8x64xf32>
    %179 = arith.mulf %177, %178 : vector<8x64xf32>
    %180 = vector.broadcast %175 : vector<1x64xf32> to vector<8x64xf32>
    %181 = arith.addf %179, %180 : vector<8x64xf32>
    %cst_71 = arith.constant 2.000000e-01 : f32
    %182 = vector.broadcast %cst_71 : f32 to vector<8x64xf32>
    %183 = arith.mulf %182, %181 : vector<8x64xf32>
    %184 = arith.maximumf %181, %183 : vector<8x64xf32>
    %c6 = arith.constant 6 : index
    %c0_72 = arith.constant 0 : index
    %c0_73 = arith.constant 0 : index
    %185 = vector.load %arg1[%c6, %c0_72, %c0_73] : memref<8x64x64xf32, #tpu.memory_space<vmem>>, vector<1x64x64xf32>
    %186 = vector.shape_cast %185 : vector<1x64x64xf32> to vector<64x64xf32>
    %cst_74 = arith.constant dense<0.000000e+00> : vector<8x64xf32>
    %187 = tpu.matmul %184, %186, %cst_74 {dimension_numbers = #tpu.dot_dimension_numbers<[1], [0], [0], [1], [0, 0, 1, 1], [], []>} : vector<8x64xf32>, vector<64x64xf32>, vector<8x64xf32> -> vector<8x64xf32>
    %cst_75 = arith.constant dense<0.000000e+00> : vector<64xf32>
    %188 = vector.multi_reduction <add>, %187, %cst_75 [0] : vector<8x64xf32> to vector<64xf32>
    %189 = vector.shape_cast %188 : vector<64xf32> to vector<1x64xf32>
    %cst_76 = arith.constant 8.000000e+00 : f32
    %190 = vector.broadcast %cst_76 : f32 to vector<1x64xf32>
    %191 = arith.divf %189, %190 : vector<1x64xf32>
    %192 = arith.mulf %187, %187 : vector<8x64xf32>
    %cst_77 = arith.constant dense<0.000000e+00> : vector<64xf32>
    %193 = vector.multi_reduction <add>, %192, %cst_77 [0] : vector<8x64xf32> to vector<64xf32>
    %194 = vector.shape_cast %193 : vector<64xf32> to vector<1x64xf32>
    %cst_78 = arith.constant 8.000000e+00 : f32
    %195 = vector.broadcast %cst_78 : f32 to vector<1x64xf32>
    %196 = arith.divf %194, %195 : vector<1x64xf32>
    %197 = arith.mulf %191, %191 : vector<1x64xf32>
    %198 = arith.subf %196, %197 : vector<1x64xf32>
    %c6_79 = arith.constant 6 : index
    %c0_80 = arith.constant 0 : index
    %c0_81 = arith.constant 0 : index
    %199 = vector.load %arg2[%c6_79, %c0_80, %c0_81] : memref<8x2x64xf32, #tpu.memory_space<vmem>>, vector<1x2x64xf32>
    %200 = vector.shape_cast %199 : vector<1x2x64xf32> to vector<2x64xf32>
    %201 = vector.extract_strided_slice %200 {offsets = [0, 0], sizes = [1, 64], strides = [1, 1]} : vector<2x64xf32> to vector<1x64xf32>
    %cst_82 = arith.constant 9.99999974E-6 : f32
    %202 = vector.broadcast %cst_82 : f32 to vector<1x64xf32>
    %203 = arith.addf %198, %202 : vector<1x64xf32>
    %204 = math.rsqrt %203 : vector<1x64xf32>
    %205 = arith.mulf %201, %204 : vector<1x64xf32>
    %206 = vector.extract_strided_slice %200 {offsets = [1, 0], sizes = [1, 64], strides = [1, 1]} : vector<2x64xf32> to vector<1x64xf32>
    %207 = vector.broadcast %191 : vector<1x64xf32> to vector<8x64xf32>
    %208 = arith.subf %187, %207 : vector<8x64xf32>
    %209 = vector.broadcast %205 : vector<1x64xf32> to vector<8x64xf32>
    %210 = arith.mulf %208, %209 : vector<8x64xf32>
    %211 = vector.broadcast %206 : vector<1x64xf32> to vector<8x64xf32>
    %212 = arith.addf %210, %211 : vector<8x64xf32>
    %213 = arith.addf %212, %153 : vector<8x64xf32>
    %cst_83 = arith.constant 2.000000e-01 : f32
    %214 = vector.broadcast %cst_83 : f32 to vector<8x64xf32>
    %215 = arith.mulf %214, %213 : vector<8x64xf32>
    %216 = arith.maximumf %213, %215 : vector<8x64xf32>
    %c7 = arith.constant 7 : index
    %c0_84 = arith.constant 0 : index
    %c0_85 = arith.constant 0 : index
    %217 = vector.load %arg1[%c7, %c0_84, %c0_85] : memref<8x64x64xf32, #tpu.memory_space<vmem>>, vector<1x64x64xf32>
    %218 = vector.shape_cast %217 : vector<1x64x64xf32> to vector<64x64xf32>
    %cst_86 = arith.constant dense<0.000000e+00> : vector<8x64xf32>
    %219 = tpu.matmul %216, %218, %cst_86 {dimension_numbers = #tpu.dot_dimension_numbers<[1], [0], [0], [1], [0, 0, 1, 1], [], []>} : vector<8x64xf32>, vector<64x64xf32>, vector<8x64xf32> -> vector<8x64xf32>
    %cst_87 = arith.constant dense<0.000000e+00> : vector<64xf32>
    %220 = vector.multi_reduction <add>, %219, %cst_87 [0] : vector<8x64xf32> to vector<64xf32>
    %221 = vector.shape_cast %220 : vector<64xf32> to vector<1x64xf32>
    %cst_88 = arith.constant 8.000000e+00 : f32
    %222 = vector.broadcast %cst_88 : f32 to vector<1x64xf32>
    %223 = arith.divf %221, %222 : vector<1x64xf32>
    %224 = arith.mulf %219, %219 : vector<8x64xf32>
    %cst_89 = arith.constant dense<0.000000e+00> : vector<64xf32>
    %225 = vector.multi_reduction <add>, %224, %cst_89 [0] : vector<8x64xf32> to vector<64xf32>
    %226 = vector.shape_cast %225 : vector<64xf32> to vector<1x64xf32>
    %cst_90 = arith.constant 8.000000e+00 : f32
    %227 = vector.broadcast %cst_90 : f32 to vector<1x64xf32>
    %228 = arith.divf %226, %227 : vector<1x64xf32>
    %229 = arith.mulf %223, %223 : vector<1x64xf32>
    %230 = arith.subf %228, %229 : vector<1x64xf32>
    %c7_91 = arith.constant 7 : index
    %c0_92 = arith.constant 0 : index
    %c0_93 = arith.constant 0 : index
    %231 = vector.load %arg2[%c7_91, %c0_92, %c0_93] : memref<8x2x64xf32, #tpu.memory_space<vmem>>, vector<1x2x64xf32>
    %232 = vector.shape_cast %231 : vector<1x2x64xf32> to vector<2x64xf32>
    %233 = vector.extract_strided_slice %232 {offsets = [0, 0], sizes = [1, 64], strides = [1, 1]} : vector<2x64xf32> to vector<1x64xf32>
    %cst_94 = arith.constant 9.99999974E-6 : f32
    %234 = vector.broadcast %cst_94 : f32 to vector<1x64xf32>
    %235 = arith.addf %230, %234 : vector<1x64xf32>
    %236 = math.rsqrt %235 : vector<1x64xf32>
    %237 = arith.mulf %233, %236 : vector<1x64xf32>
    %238 = vector.extract_strided_slice %232 {offsets = [1, 0], sizes = [1, 64], strides = [1, 1]} : vector<2x64xf32> to vector<1x64xf32>
    %239 = vector.broadcast %223 : vector<1x64xf32> to vector<8x64xf32>
    %240 = arith.subf %219, %239 : vector<8x64xf32>
    %241 = vector.broadcast %237 : vector<1x64xf32> to vector<8x64xf32>
    %242 = arith.mulf %240, %241 : vector<8x64xf32>
    %243 = vector.broadcast %238 : vector<1x64xf32> to vector<8x64xf32>
    %244 = arith.addf %242, %243 : vector<8x64xf32>
    %245 = vector.extract_strided_slice %244 {offsets = [0, 0], sizes = [8, 16], strides = [1, 1]} : vector<8x64xf32> to vector<8x16xf32>
    %c0_95 = arith.constant 0 : index
    %c0_96 = arith.constant 0 : index
    %246 = vector.load %arg3[%c0_95, %c0_96] : memref<8x16xf32, #tpu.memory_space<vmem>>, vector<8x16xf32>
    tpu.vector_store %arg3[%c0_95, %c0_96], %245 {strides = array<i32>} : memref<8x16xf32, #tpu.memory_space<vmem>>, vector<8x16xf32>,
    return
  }
}

</mosaic_0001>

<llo_original>
// kernel: deepmds_forward_pallas.1
$region0: #{deepmds_forward_pallas.1}
  #allocation0 [shape = 'u32[]', space=smem, size = 0x4, offset = 0x4, fixed_abs, tag = 'smem constant byte address 0x4 - core index']
  #allocation1 [shape = 'u32[144,128]{1,0:T(1,128)}', space=vmem, size = 0x12000, scoped, tag = 'internal scratch']
  %s0 = inlined_call_operand.hbm [shape: f32[8,64], index: 0, kind: input, shape index: {}]
  %s1 = inlined_call_operand.hbm [shape: f32[8,64,64], index: 1, kind: input, shape index: {}]
  %s2 = inlined_call_operand.hbm [shape: f32[8,2,64], index: 2, kind: input, shape index: {}]
  %s3 = inlined_call_operand.hbm [shape: f32[8,16], index: 3, kind: output, shape index: {}]
  %s4 = sld [smem:[#allocation0]]
  $region34: #{deepmds_forward_pallas.1} parent=0
    _
  %s6 = ssub.s32 1, %s4
  %s7 = scalar_select 0, %s6, %s4
  $region1: #{deepmds_forward_pallas.1} parent=0
    #allocation2 [shape = 'u8[4096]{0}', space=vmem, size = 0x1000, scoped, tag = 'input window, operand 0, single buffered']
    #allocation3 [shape = 's32[1]{0}', space=sflag, size = 0x4, scoped, tag = 'scoped memory for deepmds_forward_pallas.1']
    #allocation4 [shape = 's32[1]{0}', space=sflag, size = 0x4, scoped, tag = 'scoped memory for deepmds_forward_pallas.1']
    #allocation5 [shape = 'u8[262144]{0}', space=vmem, size = 0x40000, scoped, tag = 'input window, operand 1, single buffered']
    #allocation6 [shape = 's32[1]{0}', space=sflag, size = 0x4, scoped, tag = 'scoped memory for deepmds_forward_pallas.1']
    #allocation7 [shape = 'u8[8192]{0}', space=vmem, size = 0x2000, scoped, tag = 'input window, operand 2, single buffered']
    #allocation8 [shape = 'u8[4096]{0}', space=vmem, size = 0x1000, scoped, tag = 'output window, operand 0, single buffered']
    %8 = vsyncpa [#allocation3], 0
    %9 = vsyncpa [#allocation6], 0
    %10 = vsyncpa [#allocation4], 0
    // Predicated region
    $region2: #{deepmds_forward_pallas.1} parent=1 // pred_check
      _
    $region3: #{deepmds_forward_pallas.1} parent=1 // pred_check_branch
      %12 = sbr.rel (0) target = $region5
    $region4: #{deepmds_forward_pallas.1} parent=1 // pred_region
      %s14 = ssub.s32 128, 128
      %15 = vsyncadd [#allocation3], %s14
      %s17 = sshll.u32 [#allocation2], 4
      %s18 = int_to_ptr.vmem [resolvable:$true] %s17
      %20 = dma.hbm_to_vmem [thread:$0]  %s0, 128, %s18, [#allocation3]
    $region5: #{deepmds_forward_pallas.1} parent=1 // pred_fallthru
      _
    // Predicated region
    $region6: #{deepmds_forward_pallas.1} parent=1 // pred_check
      _
    $region7: #{deepmds_forward_pallas.1} parent=1 // pred_check_branch
      %22 = sbr.rel (0) target = $region9
    $region8: #{deepmds_forward_pallas.1} parent=1 // pred_region
      %s24 = ssub.s32 8192, 8192
      %25 = vsyncadd [#allocation6], %s24
      %s26 = sshll.u32 [#allocation5], 4
      %s27 = int_to_ptr.vmem [resolvable:$true] %s26
      %32 = dma.hbm_to_vmem [thread:$0]  %s1, 8192, %s27, [#allocation6], 128, 128, 8
    $region9: #{deepmds_forward_pallas.1} parent=1 // pred_fallthru
      _
    // Predicated region
    $region10: #{deepmds_forward_pallas.1} parent=1 // pred_check
      _
    $region11: #{deepmds_forward_pallas.1} parent=1 // pred_check_branch
      %34 = sbr.rel (0) target = $region13
    $region12: #{deepmds_forward_pallas.1} parent=1 // pred_region
      %s36 = ssub.s32 256, 256
      %37 = vsyncadd [#allocation6], %s36
      %s38 = sshll.u32 [#allocation7], 4
      %s39 = int_to_ptr.vmem [resolvable:$true] %s38
      %44 = dma.hbm_to_vmem [thread:$0]  %s2, 256, %s39, [#allocation6], 32, 32, 2
    $region13: #{deepmds_forward_pallas.1} parent=1 // pred_fallthru
      _
    // Predicated region
    $region14: #{deepmds_forward_pallas.1} parent=1 // pred_check
      _
    $region15: #{deepmds_forward_pallas.1} parent=1 // pred_check_branch
      %46 = sbr.rel (0) target = $region17
    $region16: #{deepmds_forward_pallas.1} parent=1 // pred_region
      %47 = dma.done [#allocation3], 128
    $region17: #{deepmds_forward_pallas.1} parent=1 // pred_fallthru
      _
    // Predicated region
    $region18: #{deepmds_forward_pallas.1} parent=1 // pred_check
      _
    $region19: #{deepmds_forward_pallas.1} parent=1 // pred_check_branch
      %49 = sbr.rel (0) target = $region21
    $region20: #{deepmds_forward_pallas.1} parent=1 // pred_region
      %50 = dma.done [#allocation6], 8192
    $region21: #{deepmds_forward_pallas.1} parent=1 // pred_fallthru
      _
    // Predicated region
    $region22: #{deepmds_forward_pallas.1} parent=1 // pred_check
      _
    $region23: #{deepmds_forward_pallas.1} parent=1 // pred_check_branch
      %52 = sbr.rel (0) target = $region25
    $region24: #{deepmds_forward_pallas.1} parent=1 // pred_region
      %53 = dma.done [#allocation6], 256
    $region25: #{deepmds_forward_pallas.1} parent=1 // pred_fallthru
      _
    %v54 = vld [vmem:[#allocation2] sm:$0xff]
    %v55 = vld [vmem:[#allocation5] sm:$0xff]
    %v56 = vld [vmem:[#allocation5 + $0x8] sm:$0xff]
    %v57 = vld [vmem:[#allocation5 + $0x10] sm:$0xff]
    %v58 = vld [vmem:[#allocation5 + $0x18] sm:$0xff]
    %v59 = vld [vmem:[#allocation5 + $0x20] sm:$0xff]
    %v60 = vld [vmem:[#allocation5 + $0x28] sm:$0xff]
    %v61 = vld [vmem:[#allocation5 + $0x30] sm:$0xff]
    %v62 = vld [vmem:[#allocation5 + $0x38] sm:$0xff]
    %vm63 = vcmask 523264
    %v65 = vsel %vm63, %v54, 0
    %67 = vmatprep.subr.mxu0 0.0
    %68 = vmatpush1.msra.mxu0 %v55
    %69 = vmatprep.subr.mxu0 0.0
    %70 = vmatpush1.msra.mxu0 %v56
    %71 = vmatprep.subr.mxu0 0.0
    %72 = vmatpush1.msra.mxu0 %v57
    %73 = vmatprep.subr.mxu0 0.0
    %74 = vmatpush1.msra.mxu0 %v58
    %75 = vmatprep.subr.mxu0 0.0
    %76 = vmatpush1.msra.mxu0 %v59
    %77 = vmatprep.subr.mxu0 0.0
    %78 = vmatpush1.msra.mxu0 %v60
    %79 = vmatprep.subr.mxu0 0.0
    %80 = vmatpush1.msra.mxu0 %v61
    %81 = vmatprep.subr.mxu0 0.0
    %82 = vmatpush1.msra.mxu0 %v62
    %83 = vmatprep.subr.mxu0 0.0
    %84 = vmatpush1.msra.mxu0 0.0
    %85 = vmatprep.subr.mxu0 0.0
    %86 = vmatpush1.msra.mxu0 0.0
    %87 = vmatprep.subr.mxu0 0.0
    %88 = vmatpush1.msra.mxu0 0.0
    %89 = vmatprep.subr.mxu0 0.0
    %90 = vmatpush1.msra.mxu0 0.0
    %91 = vmatprep.subr.mxu0 0.0
    %92 = vmatpush1.msra.mxu0 0.0
    %93 = vmatprep.subr.mxu0 0.0
    %94 = vmatpush1.msra.mxu0 0.0
    %95 = vmatprep.subr.mxu0 0.0
    %96 = vmatpush1.msra.mxu0 0.0
    %97 = vmatprep.subr.mxu0 0.0
    %98 = vmatpush1.msra.mxu0 0.0
    %99 = vmatprep.subr.mxu0 0.0
    %100 = vmatpush1.msra.mxu0 0.0
    %101 = vmatprep.subr.mxu0 0.0
    %102 = vmatpush1.msra.mxu0 0.0
    %103 = vmatprep.subr.mxu0 0.0
    %104 = vmatpush1.msra.mxu0 0.0
    %105 = vmatprep.subr.mxu0 0.0
    %106 = vmatpush1.msra.mxu0 0.0
    %107 = vmatprep.subr.mxu0 0.0
    %108 = vmatpush1.msra.mxu0 0.0
    %109 = vmatprep.subr.mxu0 0.0
    %110 = vmatpush1.msra.mxu0 0.0
    %111 = vmatprep.subr.mxu0 0.0
    %112 = vmatpush1.msra.mxu0 0.0
    %113 = vmatprep.subr.mxu0 0.0
    %114 = vmatpush1.msra.mxu0 0.0
    %115 = vmatprep.subr.mxu0 0.0
    %116 = vmatpush1.msra.mxu0 0.0
    %117 = vmatprep.subr.mxu0 0.0
    %118 = vmatpush1.msra.mxu0 0.0
    %119 = vmatprep.subr.mxu0 0.0
    %120 = vmatpush1.msra.mxu0 0.0
    %121 = vmatprep.subr.mxu0 0.0
    %122 = vmatpush1.msra.mxu0 0.0
    %123 = vmatprep.subr.mxu0 0.0
    %124 = vmatpush1.msra.mxu0 0.0
    %125 = vmatprep.subr.mxu0 0.0
    %126 = vmatpush1.msra.mxu0 0.0
    %127 = vmatprep.subr.mxu0 0.0
    %128 = vmatpush1.msra.mxu0 0.0
    %129 = vmatprep.subr.mxu0 0.0
    %130 = vmatpush1.msra.mxu0 0.0
    %131 = vmatprep.mubr.f32.mxu0 0.0
    %132 = vmatmul.mubr.f32.gmra.mrb[0].mxu0 %v65
    %v133 = vpop.f32.mrb[0].mxu0
    %v134 = vadd.f32 0.0, %v133
    %v135 = vpop.f32.mrb[0].mxu0
    %136 = vdwg.mxu0
    %v137 = vsel %vm63, %v134, 0.0
    %v138 = vrot.slane %v137, 4
    %v139 = vadd.f32 %v137, %v138
    %v140 = vrot.slane %v139, 2
    %v141 = vadd.f32 %v139, %v140
    %v142 = vrot.slane %v141, 1
    %v143 = vadd.f32 %v141, %v142
    %v144 = vrcp.pop 8.0
    %v145 = vmul.f32 %v143, %v144
    %v146 = vmul.f32 %v134, %v134
    %v147 = vsel %vm63, %v146, 0.0
    %v148 = vrot.slane %v147, 4
    %v149 = vadd.f32 %v147, %v148
    %v150 = vrot.slane %v149, 2
    %v151 = vadd.f32 %v149, %v150
    %v152 = vrot.slane %v151, 1
    %v153 = vadd.f32 %v151, %v152
    %v154 = vmul.f32 %v153, %v144
    %v155 = vmul.f32 %v145, %v145
    %v156 = vsub.f32 %v154, %v155
    %v157 = vld [vmem:[#allocation7] sm:$0x3]
    %v158 = vadd.f32 %v156, 1e-05
    %v159 = vrsqrt.pop %v158
    %v160 = vmul.f32 %v157, %v159
    %v161 = vsub.f32 %v134, %v145
    %v162 = vlaneseq
    %v163 = vshrl.u32 %v162, 7
    %v164 = vsub.s32 0, %v163
    %v165 = vrot.slane %v160, %v164
    %v166 = vmul.f32 %v161, %v165
    %v167 = vlaneseq
    %v168 = vshrl.u32 %v167, 7
    %v169 = vsub.s32 1, %v168
    %v170 = vrot.slane %v157, %v169
    %v171 = vadd.f32 %v166, %v170
    %v172 = vmul.f32 %v171, 0.2
    %v173 = vmax.f32 %v171, %v172
    %s174 = scalar_lea.vmem [#allocation5], 64
    %v175 = vld [vmem:[%s174] sm:$0xff]
    %v176 = vld [vmem:[%s174 + $0x8] sm:$0xff]
    %v177 = vld [vmem:[%s174 + $0x10] sm:$0xff]
    %v178 = vld [vmem:[%s174 + $0x18] sm:$0xff]
    %v179 = vld [vmem:[%s174 + $0x20] sm:$0xff]
    %v180 = vld [vmem:[%s174 + $0x28] sm:$0xff]
    %v181 = vld [vmem:[%s174 + $0x30] sm:$0xff]
    %v182 = vld [vmem:[%s174 + $0x38] sm:$0xff]
    %v184 = vsel %vm63, %v173, 0
    %186 = vmatprep.subr.mxu0 0.0
    %187 = vmatpush1.msra.mxu0 %v175
    %188 = vmatprep.subr.mxu0 0.0
    %189 = vmatpush1.msra.mxu0 %v176
    %190 = vmatprep.subr.mxu0 0.0
    %191 = vmatpush1.msra.mxu0 %v177
    %192 = vmatprep.subr.mxu0 0.0
    %193 = vmatpush1.msra.mxu0 %v178
    %194 = vmatprep.subr.mxu0 0.0
    %195 = vmatpush1.msra.mxu0 %v179
    %196 = vmatprep.subr.mxu0 0.0
    %197 = vmatpush1.msra.mxu0 %v180
    %198 = vmatprep.subr.mxu0 0.0
    %199 = vmatpush1.msra.mxu0 %v181
    %200 = vmatprep.subr.mxu0 0.0
    %201 = vmatpush1.msra.mxu0 %v182
    %202 = vmatprep.subr.mxu0 0.0
    %203 = vmatpush1.msra.mxu0 0.0
    %204 = vmatprep.subr.mxu0 0.0
    %205 = vmatpush1.msra.mxu0 0.0
    %206 = vmatprep.subr.mxu0 0.0
    %207 = vmatpush1.msra.mxu0 0.0
    %208 = vmatprep.subr.mxu0 0.0
    %209 = vmatpush1.msra.mxu0 0.0
    %210 = vmatprep.subr.mxu0 0.0
    %211 = vmatpush1.msra.mxu0 0.0
    %212 = vmatprep.subr.mxu0 0.0
    %213 = vmatpush1.msra.mxu0 0.0
    %214 = vmatprep.subr.mxu0 0.0
    %215 = vmatpush1.msra.mxu0 0.0
    %216 = vmatprep.subr.mxu0 0.0
    %217 = vmatpush1.msra.mxu0 0.0
    %218 = vmatprep.subr.mxu0 0.0
    %219 = vmatpush1.msra.mxu0 0.0
    %220 = vmatprep.subr.mxu0 0.0
    %221 = vmatpush1.msra.mxu0 0.0
    %222 = vmatprep.subr.mxu0 0.0
    %223 = vmatpush1.msra.mxu0 0.0
    %224 = vmatprep.subr.mxu0 0.0
    %225 = vmatpush1.msra.mxu0 0.0
    %226 = vmatprep.subr.mxu0 0.0
    %227 = vmatpush1.msra.mxu0 0.0
    %228 = vmatprep.subr.mxu0 0.0
    %229 = vmatpush1.msra.mxu0 0.0
    %230 = vmatprep.subr.mxu0 0.0
    %231 = vmatpush1.msra.mxu0 0.0
    %232 = vmatprep.subr.mxu0 0.0
    %233 = vmatpush1.msra.mxu0 0.0
    %234 = vmatprep.subr.mxu0 0.0
    %235 = vmatpush1.msra.mxu0 0.0
    %236 = vmatprep.subr.mxu0 0.0
    %237 = vmatpush1.msra.mxu0 0.0
    %238 = vmatprep.subr.mxu0 0.0
    %239 = vmatpush1.msra.mxu0 0.0
    %240 = vmatprep.subr.mxu0 0.0
    %241 = vmatpush1.msra.mxu0 0.0
    %242 = vmatprep.subr.mxu0 0.0
    %243 = vmatpush1.msra.mxu0 0.0
    %244 = vmatprep.subr.mxu0 0.0
    %245 = vmatpush1.msra.mxu0 0.0
    %246 = vmatprep.subr.mxu0 0.0
    %247 = vmatpush1.msra.mxu0 0.0
    %248 = vmatprep.subr.mxu0 0.0
    %249 = vmatpush1.msra.mxu0 0.0
    %250 = vmatprep.mubr.f32.mxu0 0.0
    %251 = vmatmul.mubr.f32.gmra.mrb[0].mxu0 %v184
    %v252 = vpop.f32.mrb[0].mxu0
    %v253 = vadd.f32 0.0, %v252
    %v254 = vpop.f32.mrb[0].mxu0
    %255 = vdwg.mxu0
    %v256 = vsel %vm63, %v253, 0.0
    %v257 = vrot.slane %v256, 4
    %v258 = vadd.f32 %v256, %v257
    %v259 = vrot.slane %v258, 2
    %v260 = vadd.f32 %v258, %v259
    %v261 = vrot.slane %v260, 1
    %v262 = vadd.f32 %v260, %v261
    %v263 = vmul.f32 %v262, %v144
    %v264 = vmul.f32 %v253, %v253
    %v265 = vsel %vm63, %v264, 0.0
    %v266 = vrot.slane %v265, 4
    %v267 = vadd.f32 %v265, %v266
    %v268 = vrot.slane %v267, 2
    %v269 = vadd.f32 %v267, %v268
    %v270 = vrot.slane %v269, 1
    %v271 = vadd.f32 %v269, %v270
    %v272 = vmul.f32 %v271, %v144
    %v273 = vmul.f32 %v263, %v263
    %v274 = vsub.f32 %v272, %v273
    %s275 = scalar_lea.vmem [#allocation7], 2
    %v276 = vld [vmem:[%s275] sm:$0x3]
    %v277 = vadd.f32 %v274, 1e-05
    %v278 = vrsqrt.pop %v277
    %v279 = vmul.f32 %v276, %v278
    %v280 = vsub.f32 %v253, %v263
    %v281 = vlaneseq
    %v282 = vshrl.u32 %v281, 7
    %v283 = vsub.s32 0, %v282
    %v284 = vrot.slane %v279, %v283
    %v285 = vmul.f32 %v280, %v284
    %v286 = vlaneseq
    %v287 = vshrl.u32 %v286, 7
    %v288 = vsub.s32 1, %v287
    %v289 = vrot.slane %v276, %v288
    %v290 = vadd.f32 %v285, %v289
    %v291 = vmul.f32 %v290, 0.2
    %v292 = vmax.f32 %v290, %v291
    %s293 = scalar_lea.vmem [#allocation5], 128
    %v294 = vld [vmem:[%s293] sm:$0xff]
    %v295 = vld [vmem:[%s293 + $0x8] sm:$0xff]
    %v296 = vld [vmem:[%s293 + $0x10] sm:$0xff]
    %v297 = vld [vmem:[%s293 + $0x18] sm:$0xff]
    %v298 = vld [vmem:[%s293 + $0x20] sm:$0xff]
    %v299 = vld [vmem:[%s293 + $0x28] sm:$0xff]
    %v300 = vld [vmem:[%s293 + $0x30] sm:$0xff]
    %v301 = vld [vmem:[%s293 + $0x38] sm:$0xff]
    %v303 = vsel %vm63, %v292, 0
    %305 = vmatprep.subr.mxu0 0.0
    %306 = vmatpush1.msra.mxu0 %v294
    %307 = vmatprep.subr.mxu0 0.0
    %308 = vmatpush1.msra.mxu0 %v295
    %309 = vmatprep.subr.mxu0 0.0
    %310 = vmatpush1.msra.mxu0 %v296
    %311 = vmatprep.subr.mxu0 0.0
    %312 = vmatpush1.msra.mxu0 %v297
    %313 = vmatprep.subr.mxu0 0.0
    %314 = vmatpush1.msra.mxu0 %v298
    %315 = vmatprep.subr.mxu0 0.0
    %316 = vmatpush1.msra.mxu0 %v299
    %317 = vmatprep.subr.mxu0 0.0
    %318 = vmatpush1.msra.mxu0 %v300
    %319 = vmatprep.subr.mxu0 0.0
    %320 = vmatpush1.msra.mxu0 %v301
    %321 = vmatprep.subr.mxu0 0.0
    %322 = vmatpush1.msra.mxu0 0.0
    %323 = vmatprep.subr.mxu0 0.0
    %324 = vmatpush1.msra.mxu0 0.0
    %325 = vmatprep.subr.mxu0 0.0
    %326 = vmatpush1.msra.mxu0 0.0
    %327 = vmatprep.subr.mxu0 0.0
    %328 = vmatpush1.msra.mxu0 0.0
    %329 = vmatprep.subr.mxu0 0.0
    %330 = vmatpush1.msra.mxu0 0.0
    %331 = vmatprep.subr.mxu0 0.0
    %332 = vmatpush1.msra.mxu0 0.0
    %333 = vmatprep.subr.mxu0 0.0
    %334 = vmatpush1.msra.mxu0 0.0
    %335 = vmatprep.subr.mxu0 0.0
    %336 = vmatpush1.msra.mxu0 0.0
    %337 = vmatprep.subr.mxu0 0.0
    %338 = vmatpush1.msra.mxu0 0.0
    %339 = vmatprep.subr.mxu0 0.0
    %340 = vmatpush1.msra.mxu0 0.0
    %341 = vmatprep.subr.mxu0 0.0
    %342 = vmatpush1.msra.mxu0 0.0
    %343 = vmatprep.subr.mxu0 0.0
    %344 = vmatpush1.msra.mxu0 0.0
    %345 = vmatprep.subr.mxu0 0.0
    %346 = vmatpush1.msra.mxu0 0.0
    %347 = vmatprep.subr.mxu0 0.0
    %348 = vmatpush1.msra.mxu0 0.0
    %349 = vmatprep.subr.mxu0 0.0
    %350 = vmatpush1.msra.mxu0 0.0
    %351 = vmatprep.subr.mxu0 0.0
    %352 = vmatpush1.msra.mxu0 0.0
    %353 = vmatprep.subr.mxu0 0.0
    %354 = vmatpush1.msra.mxu0 0.0
    %355 = vmatprep.subr.mxu0 0.0
    %356 = vmatpush1.msra.mxu0 0.0
    %357 = vmatprep.subr.mxu0 0.0
    %358 = vmatpush1.msra.mxu0 0.0
    %359 = vmatprep.subr.mxu0 0.0
    %360 = vmatpush1.msra.mxu0 0.0
    %361 = vmatprep.subr.mxu0 0.0
    %362 = vmatpush1.msra.mxu0 0.0
    %363 = vmatprep.subr.mxu0 0.0
    %364 = vmatpush1.msra.mxu0 0.0
    %365 = vmatprep.subr.mxu0 0.0
    %366 = vmatpush1.msra.mxu0 0.0
    %367 = vmatprep.subr.mxu0 0.0
    %368 = vmatpush1.msra.mxu0 0.0
    %369 = vmatprep.mubr.f32.mxu0 0.0
    %370 = vmatmul.mubr.f32.gmra.mrb[0].mxu0 %v303
    %v371 = vpop.f32.mrb[0].mxu0
    %v372 = vadd.f32 0.0, %v371
    %v373 = vpop.f32.mrb[0].mxu0
    %374 = vdwg.mxu0
    %v375 = vsel %vm63, %v372, 0.0
    %v376 = vrot.slane %v375, 4
    %v377 = vadd.f32 %v375, %v376
    %v378 = vrot.slane %v377, 2
    %v379 = vadd.f32 %v377, %v378
    %v380 = vrot.slane %v379, 1
    %v381 = vadd.f32 %v379, %v380
    %v382 = vmul.f32 %v381, %v144
    %v383 = vmul.f32 %v372, %v372
    %v384 = vsel %vm63, %v383, 0.0
    %v385 = vrot.slane %v384, 4
    %v386 = vadd.f32 %v384, %v385
    %v387 = vrot.slane %v386, 2
    %v388 = vadd.f32 %v386, %v387
    %v389 = vrot.slane %v388, 1
    %v390 = vadd.f32 %v388, %v389
    %v391 = vmul.f32 %v390, %v144
    %v392 = vmul.f32 %v382, %v382
    %v393 = vsub.f32 %v391, %v392
    %s394 = scalar_lea.vmem [#allocation7], 4
    %v395 = vld [vmem:[%s394] sm:$0x3]
    %v396 = vadd.f32 %v393, 1e-05
    %v397 = vrsqrt.pop %v396
    %v398 = vmul.f32 %v395, %v397
    %v399 = vsub.f32 %v372, %v382
    %v400 = vlaneseq
    %v401 = vshrl.u32 %v400, 7
    %v402 = vsub.s32 0, %v401
    %v403 = vrot.slane %v398, %v402
    %v404 = vmul.f32 %v399, %v403
    %v405 = vlaneseq
    %v406 = vshrl.u32 %v405, 7
    %v407 = vsub.s32 1, %v406
    %v408 = vrot.slane %v395, %v407
    %v409 = vadd.f32 %v404, %v408
    %v410 = vadd.f32 %v409, %v173
    %v411 = vmul.f32 %v410, 0.2
    %v412 = vmax.f32 %v410, %v411
    %s413 = scalar_lea.vmem [#allocation5], 192
    %v414 = vld [vmem:[%s413] sm:$0xff]
    %v415 = vld [vmem:[%s413 + $0x8] sm:$0xff]
    %v416 = vld [vmem:[%s413 + $0x10] sm:$0xff]
    %v417 = vld [vmem:[%s413 + $0x18] sm:$0xff]
    %v418 = vld [vmem:[%s413 + $0x20] sm:$0xff]
    %v419 = vld [vmem:[%s413 + $0x28] sm:$0xff]
    %v420 = vld [vmem:[%s413 + $0x30] sm:$0xff]
    %v421 = vld [vmem:[%s413 + $0x38] sm:$0xff]
    %v423 = vsel %vm63, %v412, 0
    %425 = vmatprep.subr.mxu0 0.0
    %426 = vmatpush1.msra.mxu0 %v414
    %427 = vmatprep.subr.mxu0 0.0
    %428 = vmatpush1.msra.mxu0 %v415
    %429 = vmatprep.subr.mxu0 0.0
    %430 = vmatpush1.msra.mxu0 %v416
    %431 = vmatprep.subr.mxu0 0.0
    %432 = vmatpush1.msra.mxu0 %v417
    %433 = vmatprep.subr.mxu0 0.0
    %434 = vmatpush1.msra.mxu0 %v418
    %435 = vmatprep.subr.mxu0 0.0
    %436 = vmatpush1.msra.mxu0 %v419
    %437 = vmatprep.subr.mxu0 0.0
    %438 = vmatpush1.msra.mxu0 %v420
    %439 = vmatprep.subr.mxu0 0.0
    %440 = vmatpush1.msra.mxu0 %v421
    %441 = vmatprep.subr.mxu0 0.0
    %442 = vmatpush1.msra.mxu0 0.0
    %443 = vmatprep.subr.mxu0 0.0
    %444 = vmatpush1.msra.mxu0 0.0
    %445 = vmatprep.subr.mxu0 0.0
    %446 = vmatpush1.msra.mxu0 0.0
    %447 = vmatprep.subr.mxu0 0.0
    %448 = vmatpush1.msra.mxu0 0.0
    %449 = vmatprep.subr.mxu0 0.0
    %450 = vmatpush1.msra.mxu0 0.0
    %451 = vmatprep.subr.mxu0 0.0
    %452 = vmatpush1.msra.mxu0 0.0
    %453 = vmatprep.subr.mxu0 0.0
    %454 = vmatpush1.msra.mxu0 0.0
    %455 = vmatprep.subr.mxu0 0.0
    %456 = vmatpush1.msra.mxu0 0.0
    %457 = vmatprep.subr.mxu0 0.0
    %458 = vmatpush1.msra.mxu0 0.0
    %459 = vmatprep.subr.mxu0 0.0
    %460 = vmatpush1.msra.mxu0 0.0
    %461 = vmatprep.subr.mxu0 0.0
    %462 = vmatpush1.msra.mxu0 0.0
    %463 = vmatprep.subr.mxu0 0.0
    %464 = vmatpush1.msra.mxu0 0.0
    %465 = vmatprep.subr.mxu0 0.0
    %466 = vmatpush1.msra.mxu0 0.0
    %467 = vmatprep.subr.mxu0 0.0
    %468 = vmatpush1.msra.mxu0 0.0
    %469 = vmatprep.subr.mxu0 0.0
    %470 = vmatpush1.msra.mxu0 0.0
    %471 = vmatprep.subr.mxu0 0.0
    %472 = vmatpush1.msra.mxu0 0.0
    %473 = vmatprep.subr.mxu0 0.0
    %474 = vmatpush1.msra.mxu0 0.0
    %475 = vmatprep.subr.mxu0 0.0
    %476 = vmatpush1.msra.mxu0 0.0
    %477 = vmatprep.subr.mxu0 0.0
    %478 = vmatpush1.msra.mxu0 0.0
    %479 = vmatprep.subr.mxu0 0.0
    %480 = vmatpush1.msra.mxu0 0.0
    %481 = vmatprep.subr.mxu0 0.0
    %482 = vmatpush1.msra.mxu0 0.0
    %483 = vmatprep.subr.mxu0 0.0
    %484 = vmatpush1.msra.mxu0 0.0
    %485 = vmatprep.subr.mxu0 0.0
    %486 = vmatpush1.msra.mxu0 0.0
    %487 = vmatprep.subr.mxu0 0.0
    %488 = vmatpush1.msra.mxu0 0.0
    %489 = vmatprep.mubr.f32.mxu0 0.0
    %490 = vmatmul.mubr.f32.gmra.mrb[0].mxu0 %v423
    %v491 = vpop.f32.mrb[0].mxu0
    %v492 = vadd.f32 0.0, %v491
    %v493 = vpop.f32.mrb[0].mxu0
    %494 = vdwg.mxu0
    %v495 = vsel %vm63, %v492, 0.0
    %v496 = vrot.slane %v495, 4
    %v497 = vadd.f32 %v495, %v496
    %v498 = vrot.slane %v497, 2
    %v499 = vadd.f32 %v497, %v498
    %v500 = vrot.slane %v499, 1
    %v501 = vadd.f32 %v499, %v500
    %v502 = vmul.f32 %v501, %v144
    %v503 = vmul.f32 %v492, %v492
    %v504 = vsel %vm63, %v503, 0.0
    %v505 = vrot.slane %v504, 4
    %v506 = vadd.f32 %v504, %v505
    %v507 = vrot.slane %v506, 2
    %v508 = vadd.f32 %v506, %v507
    %v509 = vrot.slane %v508, 1
    %v510 = vadd.f32 %v508, %v509
    %v511 = vmul.f32 %v510, %v144
    %v512 = vmul.f32 %v502, %v502
    %v513 = vsub.f32 %v511, %v512
    %s514 = scalar_lea.vmem [#allocation7], 6
    %v515 = vld [vmem:[%s514] sm:$0x3]
    %v516 = vadd.f32 %v513, 1e-05
    %v517 = vrsqrt.pop %v516
    %v518 = vmul.f32 %v515, %v517
    %v519 = vsub.f32 %v492, %v502
    %v520 = vlaneseq
    %v521 = vshrl.u32 %v520, 7
    %v522 = vsub.s32 0, %v521
    %v523 = vrot.slane %v518, %v522
    %v524 = vmul.f32 %v519, %v523
    %v525 = vlaneseq
    %v526 = vshrl.u32 %v525, 7
    %v527 = vsub.s32 1, %v526
    %v528 = vrot.slane %v515, %v527
    %v529 = vadd.f32 %v524, %v528
    %s530 = scalar_lea.vmem [#allocation5], 256
    %v531 = vld [vmem:[%s530] sm:$0xff]
    %v532 = vld [vmem:[%s530 + $0x8] sm:$0xff]
    %v533 = vld [vmem:[%s530 + $0x10] sm:$0xff]
    %v534 = vld [vmem:[%s530 + $0x18] sm:$0xff]
    %v535 = vld [vmem:[%s530 + $0x20] sm:$0xff]
    %v536 = vld [vmem:[%s530 + $0x28] sm:$0xff]
    %v537 = vld [vmem:[%s530 + $0x30] sm:$0xff]
    %v538 = vld [vmem:[%s530 + $0x38] sm:$0xff]
    %v540 = vsel %vm63, %v529, 0
    %542 = vmatprep.subr.mxu0 0.0
    %543 = vmatpush1.msra.mxu0 %v531
    %544 = vmatprep.subr.mxu0 0.0
    %545 = vmatpush1.msra.mxu0 %v532
    %546 = vmatprep.subr.mxu0 0.0
    %547 = vmatpush1.msra.mxu0 %v533
    %548 = vmatprep.subr.mxu0 0.0
    %549 = vmatpush1.msra.mxu0 %v534
    %550 = vmatprep.subr.mxu0 0.0
    %551 = vmatpush1.msra.mxu0 %v535
    %552 = vmatprep.subr.mxu0 0.0
    %553 = vmatpush1.msra.mxu0 %v536
    %554 = vmatprep.subr.mxu0 0.0
    %555 = vmatpush1.msra.mxu0 %v537
    %556 = vmatprep.subr.mxu0 0.0
    %557 = vmatpush1.msra.mxu0 %v538
    %558 = vmatprep.subr.mxu0 0.0
    %559 = vmatpush1.msra.mxu0 0.0
    %560 = vmatprep.subr.mxu0 0.0
    %561 = vmatpush1.msra.mxu0 0.0
    %562 = vmatprep.subr.mxu0 0.0
    %563 = vmatpush1.msra.mxu0 0.0
    %564 = vmatprep.subr.mxu0 0.0
    %565 = vmatpush1.msra.mxu0 0.0
    %566 = vmatprep.subr.mxu0 0.0
    %567 = vmatpush1.msra.mxu0 0.0
    %568 = vmatprep.subr.mxu0 0.0
    %569 = vmatpush1.msra.mxu0 0.0
    %570 = vmatprep.subr.mxu0 0.0
    %571 = vmatpush1.msra.mxu0 0.0
    %572 = vmatprep.subr.mxu0 0.0
    %573 = vmatpush1.msra.mxu0 0.0
    %574 = vmatprep.subr.mxu0 0.0
    %575 = vmatpush1.msra.mxu0 0.0
    %576 = vmatprep.subr.mxu0 0.0
    %577 = vmatpush1.msra.mxu0 0.0
    %578 = vmatprep.subr.mxu0 0.0
    %579 = vmatpush1.msra.mxu0 0.0
    %580 = vmatprep.subr.mxu0 0.0
    %581 = vmatpush1.msra.mxu0 0.0
    %582 = vmatprep.subr.mxu0 0.0
    %583 = vmatpush1.msra.mxu0 0.0
    %584 = vmatprep.subr.mxu0 0.0
    %585 = vmatpush1.msra.mxu0 0.0
    %586 = vmatprep.subr.mxu0 0.0
    %587 = vmatpush1.msra.mxu0 0.0
    %588 = vmatprep.subr.mxu0 0.0
    %589 = vmatpush1.msra.mxu0 0.0
    %590 = vmatprep.subr.mxu0 0.0
    %591 = vmatpush1.msra.mxu0 0.0
    %592 = vmatprep.subr.mxu0 0.0
    %593 = vmatpush1.msra.mxu0 0.0
    %594 = vmatprep.subr.mxu0 0.0
    %595 = vmatpush1.msra.mxu0 0.0
    %596 = vmatprep.subr.mxu0 0.0
    %597 = vmatpush1.msra.mxu0 0.0
    %598 = vmatprep.subr.mxu0 0.0
    %599 = vmatpush1.msra.mxu0 0.0
    %600 = vmatprep.subr.mxu0 0.0
    %601 = vmatpush1.msra.mxu0 0.0
    %602 = vmatprep.subr.mxu0 0.0
    %603 = vmatpush1.msra.mxu0 0.0
    %604 = vmatprep.subr.mxu0 0.0
    %605 = vmatpush1.msra.mxu0 0.0
    %606 = vmatprep.mubr.f32.mxu0 0.0
    %607 = vmatmul.mubr.f32.gmra.mrb[0].mxu0 %v540
    %v608 = vpop.f32.mrb[0].mxu0
    %v609 = vadd.f32 0.0, %v608
    %v610 = vpop.f32.mrb[0].mxu0
    %611 = vdwg.mxu0
    %v612 = vsel %vm63, %v609, 0.0
    %v613 = vrot.slane %v612, 4
    %v614 = vadd.f32 %v612, %v613
    %v615 = vrot.slane %v614, 2
    %v616 = vadd.f32 %v614, %v615
    %v617 = vrot.slane %v616, 1
    %v618 = vadd.f32 %v616, %v617
    %v619 = vmul.f32 %v618, %v144
    %v620 = vmul.f32 %v609, %v609
    %v621 = vsel %vm63, %v620, 0.0
    %v622 = vrot.slane %v621, 4
    %v623 = vadd.f32 %v621, %v622
    %v624 = vrot.slane %v623, 2
    %v625 = vadd.f32 %v623, %v624
    %v626 = vrot.slane %v625, 1
    %v627 = vadd.f32 %v625, %v626
    %v628 = vmul.f32 %v627, %v144
    %v629 = vmul.f32 %v619, %v619
    %v630 = vsub.f32 %v628, %v629
    %s631 = scalar_lea.vmem [#allocation7], 8
    %v632 = vld [vmem:[%s631] sm:$0x3]
    %v633 = vadd.f32 %v630, 1e-05
    %v634 = vrsqrt.pop %v633
    %v635 = vmul.f32 %v632, %v634
    %v636 = vsub.f32 %v609, %v619
    %v637 = vlaneseq
    %v638 = vshrl.u32 %v637, 7
    %v639 = vsub.s32 0, %v638
    %v640 = vrot.slane %v635, %v639
    %v641 = vmul.f32 %v636, %v640
    %v642 = vlaneseq
    %v643 = vshrl.u32 %v642, 7
    %v644 = vsub.s32 1, %v643
    %v645 = vrot.slane %v632, %v644
    %v646 = vadd.f32 %v641, %v645
    %v647 = vmul.f32 %v646, 0.2
    %v648 = vmax.f32 %v646, %v647
    %s649 = scalar_lea.vmem [#allocation5], 320
    %v650 = vld [vmem:[%s649] sm:$0xff]
    %v651 = vld [vmem:[%s649 + $0x8] sm:$0xff]
    %v652 = vld [vmem:[%s649 + $0x10] sm:$0xff]
    %v653 = vld [vmem:[%s649 + $0x18] sm:$0xff]
    %v654 = vld [vmem:[%s649 + $0x20] sm:$0xff]
    %v655 = vld [vmem:[%s649 + $0x28] sm:$0xff]
    %v656 = vld [vmem:[%s649 + $0x30] sm:$0xff]
    %v657 = vld [vmem:[%s649 + $0x38] sm:$0xff]
    %v659 = vsel %vm63, %v648, 0
    %661 = vmatprep.subr.mxu0 0.0
    %662 = vmatpush1.msra.mxu0 %v650
    %663 = vmatprep.subr.mxu0 0.0
    %664 = vmatpush1.msra.mxu0 %v651
    %665 = vmatprep.subr.mxu0 0.0
    %666 = vmatpush1.msra.mxu0 %v652
    %667 = vmatprep.subr.mxu0 0.0
    %668 = vmatpush1.msra.mxu0 %v653
    %669 = vmatprep.subr.mxu0 0.0
    %670 = vmatpush1.msra.mxu0 %v654
    %671 = vmatprep.subr.mxu0 0.0
    %672 = vmatpush1.msra.mxu0 %v655
    %673 = vmatprep.subr.mxu0 0.0
    %674 = vmatpush1.msra.mxu0 %v656
    %675 = vmatprep.subr.mxu0 0.0
    %676 = vmatpush1.msra.mxu0 %v657
    %677 = vmatprep.subr.mxu0 0.0
    %678 = vmatpush1.msra.mxu0 0.0
    %679 = vmatprep.subr.mxu0 0.0
    %680 = vmatpush1.msra.mxu0 0.0
    %681 = vmatprep.subr.mxu0 0.0
    %682 = vmatpush1.msra.mxu0 0.0
    %683 = vmatprep.subr.mxu0 0.0
    %684 = vmatpush1.msra.mxu0 0.0
    %685 = vmatprep.subr.mxu0 0.0
    %686 = vmatpush1.msra.mxu0 0.0
    %687 = vmatprep.subr.mxu0 0.0
    %688 = vmatpush1.msra.mxu0 0.0
    %689 = vmatprep.subr.mxu0 0.0
    %690 = vmatpush1.msra.mxu0 0.0
    %691 = vmatprep.subr.mxu0 0.0
    %692 = vmatpush1.msra.mxu0 0.0
    %693 = vmatprep.subr.mxu0 0.0
    %694 = vmatpush1.msra.mxu0 0.0
    %695 = vmatprep.subr.mxu0 0.0
    %696 = vmatpush1.msra.mxu0 0.0
    %697 = vmatprep.subr.mxu0 0.0
    %698 = vmatpush1.msra.mxu0 0.0
    %699 = vmatprep.subr.mxu0 0.0
    %700 = vmatpush1.msra.mxu0 0.0
    %701 = vmatprep.subr.mxu0 0.0
    %702 = vmatpush1.msra.mxu0 0.0
    %703 = vmatprep.subr.mxu0 0.0
    %704 = vmatpush1.msra.mxu0 0.0
    %705 = vmatprep.subr.mxu0 0.0
    %706 = vmatpush1.msra.mxu0 0.0
    %707 = vmatprep.subr.mxu0 0.0
    %708 = vmatpush1.msra.mxu0 0.0
    %709 = vmatprep.subr.mxu0 0.0
    %710 = vmatpush1.msra.mxu0 0.0
    %711 = vmatprep.subr.mxu0 0.0
    %712 = vmatpush1.msra.mxu0 0.0
    %713 = vmatprep.subr.mxu0 0.0
    %714 = vmatpush1.msra.mxu0 0.0
    %715 = vmatprep.subr.mxu0 0.0
    %716 = vmatpush1.msra.mxu0 0.0
    %717 = vmatprep.subr.mxu0 0.0
    %718 = vmatpush1.msra.mxu0 0.0
    %719 = vmatprep.subr.mxu0 0.0
    %720 = vmatpush1.msra.mxu0 0.0
    %721 = vmatprep.subr.mxu0 0.0
    %722 = vmatpush1.msra.mxu0 0.0
    %723 = vmatprep.subr.mxu0 0.0
    %724 = vmatpush1.msra.mxu0 0.0
    %725 = vmatprep.mubr.f32.mxu0 0.0
    %726 = vmatmul.mubr.f32.gmra.mrb[0].mxu0 %v659
    %v727 = vpop.f32.mrb[0].mxu0
    %v728 = vadd.f32 0.0, %v727
    %v729 = vpop.f32.mrb[0].mxu0
    %730 = vdwg.mxu0
    %v731 = vsel %vm63, %v728, 0.0
    %v732 = vrot.slane %v731, 4
    %v733 = vadd.f32 %v731, %v732
    %v734 = vrot.slane %v733, 2
    %v735 = vadd.f32 %v733, %v734
    %v736 = vrot.slane %v735, 1
    %v737 = vadd.f32 %v735, %v736
    %v738 = vmul.f32 %v737, %v144
    %v739 = vmul.f32 %v728, %v728
    %v740 = vsel %vm63, %v739, 0.0
    %v741 = vrot.slane %v740, 4
    %v742 = vadd.f32 %v740, %v741
    %v743 = vrot.slane %v742, 2
    %v744 = vadd.f32 %v742, %v743
    %v745 = vrot.slane %v744, 1
    %v746 = vadd.f32 %v744, %v745
    %v747 = vmul.f32 %v746, %v144
    %v748 = vmul.f32 %v738, %v738
    %v749 = vsub.f32 %v747, %v748
    %s750 = scalar_lea.vmem [#allocation7], 10
    %v751 = vld [vmem:[%s750] sm:$0x3]
    %v752 = vadd.f32 %v749, 1e-05
    %v753 = vrsqrt.pop %v752
    %v754 = vmul.f32 %v751, %v753
    %v755 = vsub.f32 %v728, %v738
    %v756 = vlaneseq
    %v757 = vshrl.u32 %v756, 7
    %v758 = vsub.s32 0, %v757
    %v759 = vrot.slane %v754, %v758
    %v760 = vmul.f32 %v755, %v759
    %v761 = vlaneseq
    %v762 = vshrl.u32 %v761, 7
    %v763 = vsub.s32 1, %v762
    %v764 = vrot.slane %v751, %v763
    %v765 = vadd.f32 %v760, %v764
    %v766 = vmul.f32 %v765, 0.2
    %v767 = vmax.f32 %v765, %v766
    %s768 = scalar_lea.vmem [#allocation5], 384
    %v769 = vld [vmem:[%s768] sm:$0xff]
    %v770 = vld [vmem:[%s768 + $0x8] sm:$0xff]
    %v771 = vld [vmem:[%s768 + $0x10] sm:$0xff]
    %v772 = vld [vmem:[%s768 + $0x18] sm:$0xff]
    %v773 = vld [vmem:[%s768 + $0x20] sm:$0xff]
    %v774 = vld [vmem:[%s768 + $0x28] sm:$0xff]
    %v775 = vld [vmem:[%s768 + $0x30] sm:$0xff]
    %v776 = vld [vmem:[%s768 + $0x38] sm:$0xff]
    %v778 = vsel %vm63, %v767, 0
    %780 = vmatprep.subr.mxu0 0.0
    %781 = vmatpush1.msra.mxu0 %v769
    %782 = vmatprep.subr.mxu0 0.0
    %783 = vmatpush1.msra.mxu0 %v770
    %784 = vmatprep.subr.mxu0 0.0
    %785 = vmatpush1.msra.mxu0 %v771
    %786 = vmatprep.subr.mxu0 0.0
    %787 = vmatpush1.msra.mxu0 %v772
    %788 = vmatprep.subr.mxu0 0.0
    %789 = vmatpush1.msra.mxu0 %v773
    %790 = vmatprep.subr.mxu0 0.0
    %791 = vmatpush1.msra.mxu0 %v774
    %792 = vmatprep.subr.mxu0 0.0
    %793 = vmatpush1.msra.mxu0 %v775
    %794 = vmatprep.subr.mxu0 0.0
    %795 = vmatpush1.msra.mxu0 %v776
    %796 = vmatprep.subr.mxu0 0.0
    %797 = vmatpush1.msra.mxu0 0.0
    %798 = vmatprep.subr.mxu0 0.0
    %799 = vmatpush1.msra.mxu0 0.0
    %800 = vmatprep.subr.mxu0 0.0
    %801 = vmatpush1.msra.mxu0 0.0
    %802 = vmatprep.subr.mxu0 0.0
    %803 = vmatpush1.msra.mxu0 0.0
    %804 = vmatprep.subr.mxu0 0.0
    %805 = vmatpush1.msra.mxu0 0.0
    %806 = vmatprep.subr.mxu0 0.0
    %807 = vmatpush1.msra.mxu0 0.0
    %808 = vmatprep.subr.mxu0 0.0
    %809 = vmatpush1.msra.mxu0 0.0
    %810 = vmatprep.subr.mxu0 0.0
    %811 = vmatpush1.msra.mxu0 0.0
    %812 = vmatprep.subr.mxu0 0.0
    %813 = vmatpush1.msra.mxu0 0.0
    %814 = vmatprep.subr.mxu0 0.0
    %815 = vmatpush1.msra.mxu0 0.0
    %816 = vmatprep.subr.mxu0 0.0
    %817 = vmatpush1.msra.mxu0 0.0
    %818 = vmatprep.subr.mxu0 0.0
    %819 = vmatpush1.msra.mxu0 0.0
    %820 = vmatprep.subr.mxu0 0.0
    %821 = vmatpush1.msra.mxu0 0.0
    %822 = vmatprep.subr.mxu0 0.0
    %823 = vmatpush1.msra.mxu0 0.0
    %824 = vmatprep.subr.mxu0 0.0
    %825 = vmatpush1.msra.mxu0 0.0
    %826 = vmatprep.subr.mxu0 0.0
    %827 = vmatpush1.msra.mxu0 0.0
    %828 = vmatprep.subr.mxu0 0.0
    %829 = vmatpush1.msra.mxu0 0.0
    %830 = vmatprep.subr.mxu0 0.0
    %831 = vmatpush1.msra.mxu0 0.0
    %832 = vmatprep.subr.mxu0 0.0
    %833 = vmatpush1.msra.mxu0 0.0
    %834 = vmatprep.subr.mxu0 0.0
    %835 = vmatpush1.msra.mxu0 0.0
    %836 = vmatprep.subr.mxu0 0.0
    %837 = vmatpush1.msra.mxu0 0.0
    %838 = vmatprep.subr.mxu0 0.0
    %839 = vmatpush1.msra.mxu0 0.0
    %840 = vmatprep.subr.mxu0 0.0
    %841 = vmatpush1.msra.mxu0 0.0
    %842 = vmatprep.subr.mxu0 0.0
    %843 = vmatpush1.msra.mxu0 0.0
    %844 = vmatprep.mubr.f32.mxu0 0.0
    %845 = vmatmul.mubr.f32.gmra.mrb[0].mxu0 %v778
    %v846 = vpop.f32.mrb[0].mxu0
    %v847 = vadd.f32 0.0, %v846
    %v848 = vpop.f32.mrb[0].mxu0
    %849 = vdwg.mxu0
    %v850 = vsel %vm63, %v847, 0.0
    %v851 = vrot.slane %v850, 4
    %v852 = vadd.f32 %v850, %v851
    %v853 = vrot.slane %v852, 2
    %v854 = vadd.f32 %v852, %v853
    %v855 = vrot.slane %v854, 1
    %v856 = vadd.f32 %v854, %v855
    %v857 = vmul.f32 %v856, %v144
    %v858 = vmul.f32 %v847, %v847
    %v859 = vsel %vm63, %v858, 0.0
    %v860 = vrot.slane %v859, 4
    %v861 = vadd.f32 %v859, %v860
    %v862 = vrot.slane %v861, 2
    %v863 = vadd.f32 %v861, %v862
    %v864 = vrot.slane %v863, 1
    %v865 = vadd.f32 %v863, %v864
    %v866 = vmul.f32 %v865, %v144
    %v867 = vmul.f32 %v857, %v857
    %v868 = vsub.f32 %v866, %v867
    %s869 = scalar_lea.vmem [#allocation7], 12
    %v870 = vld [vmem:[%s869] sm:$0x3]
    %v871 = vadd.f32 %v868, 1e-05
    %v872 = vrsqrt.pop %v871
    %v873 = vmul.f32 %v870, %v872
    %v874 = vsub.f32 %v847, %v857
    %v875 = vlaneseq
    %v876 = vshrl.u32 %v875, 7
    %v877 = vsub.s32 0, %v876
    %v878 = vrot.slane %v873, %v877
    %v879 = vmul.f32 %v874, %v878
    %v880 = vlaneseq
    %v881 = vshrl.u32 %v880, 7
    %v882 = vsub.s32 1, %v881
    %v883 = vrot.slane %v870, %v882
    %v884 = vadd.f32 %v879, %v883
    %v885 = vadd.f32 %v884, %v648
    %v886 = vmul.f32 %v885, 0.2
    %v887 = vmax.f32 %v885, %v886
    %s888 = scalar_lea.vmem [#allocation5], 448
    %v889 = vld [vmem:[%s888] sm:$0xff]
    %v890 = vld [vmem:[%s888 + $0x8] sm:$0xff]
    %v891 = vld [vmem:[%s888 + $0x10] sm:$0xff]
    %v892 = vld [vmem:[%s888 + $0x18] sm:$0xff]
    %v893 = vld [vmem:[%s888 + $0x20] sm:$0xff]
    %v894 = vld [vmem:[%s888 + $0x28] sm:$0xff]
    %v895 = vld [vmem:[%s888 + $0x30] sm:$0xff]
    %v896 = vld [vmem:[%s888 + $0x38] sm:$0xff]
    %v898 = vsel %vm63, %v887, 0
    %900 = vmatprep.subr.mxu0 0.0
    %901 = vmatpush1.msra.mxu0 %v889
    %902 = vmatprep.subr.mxu0 0.0
    %903 = vmatpush1.msra.mxu0 %v890
    %904 = vmatprep.subr.mxu0 0.0
    %905 = vmatpush1.msra.mxu0 %v891
    %906 = vmatprep.subr.mxu0 0.0
    %907 = vmatpush1.msra.mxu0 %v892
    %908 = vmatprep.subr.mxu0 0.0
    %909 = vmatpush1.msra.mxu0 %v893
    %910 = vmatprep.subr.mxu0 0.0
    %911 = vmatpush1.msra.mxu0 %v894
    %912 = vmatprep.subr.mxu0 0.0
    %913 = vmatpush1.msra.mxu0 %v895
    %914 = vmatprep.subr.mxu0 0.0
    %915 = vmatpush1.msra.mxu0 %v896
    %916 = vmatprep.subr.mxu0 0.0
    %917 = vmatpush1.msra.mxu0 0.0
    %918 = vmatprep.subr.mxu0 0.0
    %919 = vmatpush1.msra.mxu0 0.0
    %920 = vmatprep.subr.mxu0 0.0
    %921 = vmatpush1.msra.mxu0 0.0
    %922 = vmatprep.subr.mxu0 0.0
    %923 = vmatpush1.msra.mxu0 0.0
    %924 = vmatprep.subr.mxu0 0.0
    %925 = vmatpush1.msra.mxu0 0.0
    %926 = vmatprep.subr.mxu0 0.0
    %927 = vmatpush1.msra.mxu0 0.0
    %928 = vmatprep.subr.mxu0 0.0
    %929 = vmatpush1.msra.mxu0 0.0
    %930 = vmatprep.subr.mxu0 0.0
    %931 = vmatpush1.msra.mxu0 0.0
    %932 = vmatprep.subr.mxu0 0.0
    %933 = vmatpush1.msra.mxu0 0.0
    %934 = vmatprep.subr.mxu0 0.0
    %935 = vmatpush1.msra.mxu0 0.0
    %936 = vmatprep.subr.mxu0 0.0
    %937 = vmatpush1.msra.mxu0 0.0
    %938 = vmatprep.subr.mxu0 0.0
    %939 = vmatpush1.msra.mxu0 0.0
    %940 = vmatprep.subr.mxu0 0.0
    %941 = vmatpush1.msra.mxu0 0.0
    %942 = vmatprep.subr.mxu0 0.0
    %943 = vmatpush1.msra.mxu0 0.0
    %944 = vmatprep.subr.mxu0 0.0
    %945 = vmatpush1.msra.mxu0 0.0
    %946 = vmatprep.subr.mxu0 0.0
    %947 = vmatpush1.msra.mxu0 0.0
    %948 = vmatprep.subr.mxu0 0.0
    %949 = vmatpush1.msra.mxu0 0.0
    %950 = vmatprep.subr.mxu0 0.0
    %951 = vmatpush1.msra.mxu0 0.0
    %952 = vmatprep.subr.mxu0 0.0
    %953 = vmatpush1.msra.mxu0 0.0
    %954 = vmatprep.subr.mxu0 0.0
    %955 = vmatpush1.msra.mxu0 0.0
    %956 = vmatprep.subr.mxu0 0.0
    %957 = vmatpush1.msra.mxu0 0.0
    %958 = vmatprep.subr.mxu0 0.0
    %959 = vmatpush1.msra.mxu0 0.0
    %960 = vmatprep.subr.mxu0 0.0
    %961 = vmatpush1.msra.mxu0 0.0
    %962 = vmatprep.subr.mxu0 0.0
    %963 = vmatpush1.msra.mxu0 0.0
    %964 = vmatprep.mubr.f32.mxu0 0.0
    %965 = vmatmul.mubr.f32.gmra.mrb[0].mxu0 %v898
    %v966 = vpop.f32.mrb[0].mxu0
    %v967 = vadd.f32 0.0, %v966
    %v968 = vpop.f32.mrb[0].mxu0
    %969 = vdwg.mxu0
    %v970 = vsel %vm63, %v967, 0.0
    %v971 = vrot.slane %v970, 4
    %v972 = vadd.f32 %v970, %v971
    %v973 = vrot.slane %v972, 2
    %v974 = vadd.f32 %v972, %v973
    %v975 = vrot.slane %v974, 1
    %v976 = vadd.f32 %v974, %v975
    %v977 = vmul.f32 %v976, %v144
    %v978 = vmul.f32 %v967, %v967
    %v979 = vsel %vm63, %v978, 0.0
    %v980 = vrot.slane %v979, 4
    %v981 = vadd.f32 %v979, %v980
    %v982 = vrot.slane %v981, 2
    %v983 = vadd.f32 %v981, %v982
    %v984 = vrot.slane %v983, 1
    %v985 = vadd.f32 %v983, %v984
    %v986 = vmul.f32 %v985, %v144
    %v987 = vmul.f32 %v977, %v977
    %v988 = vsub.f32 %v986, %v987
    %s989 = scalar_lea.vmem [#allocation7], 14
    %v990 = vld [vmem:[%s989] sm:$0x3]
    %v991 = vadd.f32 %v988, 1e-05
    %v992 = vrsqrt.pop %v991
    %v993 = vmul.f32 %v990, %v992
    %v994 = vsub.f32 %v967, %v977
    %v995 = vlaneseq
    %v996 = vshrl.u32 %v995, 7
    %v997 = vsub.s32 0, %v996
    %v998 = vrot.slane %v993, %v997
    %v999 = vmul.f32 %v994, %v998
    %v1000 = vlaneseq
    %v1001 = vshrl.u32 %v1000, 7
    %v1002 = vsub.s32 1, %v1001
    %v1003 = vrot.slane %v990, %v1002
    %v1004 = vadd.f32 %v999, %v1003
    %vm1005 = vcmask 130048
    %1006 = vst.msk [vmem:[#allocation8] sm:$0xff] %vm1005, %v1004
    // Predicated region
    $region26: #{deepmds_forward_pallas.1} parent=1 // pred_check
      _
    $region27: #{deepmds_forward_pallas.1} parent=1 // pred_check_branch
      %1008 = sbr.rel (0) target = $region29
    $region28: #{deepmds_forward_pallas.1} parent=1 // pred_region
      %s1010 = ssub.s32 128, 128
      %1011 = vsyncadd [#allocation4], %s1010
      %s1013 = sshll.u32 [#allocation8], 4
      %s1014 = int_to_ptr.vmem [resolvable:$true] %s1013
      %1016 = dma.vmem_to_hbm [thread:$0]  %s1014, 128, %s3, [#allocation4]
    $region29: #{deepmds_forward_pallas.1} parent=1 // pred_fallthru
      _
    // Predicated region
    $region30: #{deepmds_forward_pallas.1} parent=1 // pred_check
      _
    $region31: #{deepmds_forward_pallas.1} parent=1 // pred_check_branch
      %1018 = sbr.rel (0) target = $region33
    $region32: #{deepmds_forward_pallas.1} parent=1 // pred_region
      %1019 = dma.done [#allocation4], 128
    $region33: #{deepmds_forward_pallas.1} parent=1 // pred_fallthru
      _
    %1020 = vsyncpa [#allocation3], 1
    %1021 = vsyncpa [#allocation6], 1
    %1022 = vsyncpa [#allocation4], 1

</llo_original>
